<compile_context>
chip_gen: v5e
topology: v5e:2x2
jax: 0.10.0
libtpu: 0.0.40
codegen_flags: <defaults>
</compile_context>

<pallas_src>
import numpy as np
import jax
import jax.numpy as jnp
from jax.experimental import pallas as pl
from jax.experimental.pallas import tpu as pltpu

# ---- module constants (hard-coded in LR_Layer2.forward) ---------------------
NLP_FIELD_BOOL = (0, 1, 1, 1, 0, 1, 1, 0)
NUM_FIELDS = len(NLP_FIELD_BOOL)                                   # 8
NLP_INDICES = tuple(i for i, b in enumerate(NLP_FIELD_BOOL) if b)  # (1, 2, 3, 5, 6)
NUM_NLP = len(NLP_INDICES)                                         # 5
LAMBDA_LLM = 0.1

_LANE = 128
_MAX_TB = 65536          # lane-dense batch tile: ~2 MB f32 per (8, tb) input tile
_VMEM_LIMIT = 32 << 20   # explicit scoped-VMEM budget (covers double-buffered 64K tiles)


def _round_up(x, m):
    return ((x + m - 1) // m) * m


def _choose_tile(batch):
    # Keep >= 2 grid steps whenever possible so ("parallel",) actually shards the batch
    # across both v7x TensorCores; harmless on v5e/v6e. Always a multiple of 128 lanes.
    tb = _round_up(pl.cdiv(batch, 2), _LANE)
    return min(_MAX_TB, tb)


# ---- Pallas kernel -----------------------------------------------------------
def lr_layer2_kernel(emb_ref, llm_ref, bias_ref, out_ref):
    # emb_ref : (NUM_FIELDS, TB) native dtype  per-field LR logits (fields on sublanes)
    # llm_ref : (NUM_NLP,   TB) native dtype  llm embeddings, nlp-slot major
    # bias_ref: (1,) f32 in SMEM
    # out_ref : (1, TB) f32
    emb_sum = jnp.sum(emb_ref[...].astype(jnp.float32), axis=0, keepdims=True)  # XLU
    llm_sum = jnp.sum(llm_ref[...].astype(jnp.float32), axis=0, keepdims=True)  # XLU
    out_ref[...] = emb_sum + LAMBDA_LLM * llm_sum + bias_ref[0]


def lr_layer2_forward(emb_fields, llm_nlp_major, bias):
    """emb_fields    : (NUM_FIELDS, B) or (NUM_FIELDS, B, 1)  stacked per-field embeddings
       llm_nlp_major : (NUM_NLP, B)  or (NUM_NLP, B, 1)       llm_emb_1 in nlp-slot-major
                       layout; row j corresponds to field NLP_INDICES[j] (contract!)
       bias          : (1,) f32
       returns       : (B, 1) f32"""
    emb2d = emb_fields.reshape(NUM_FIELDS, -1)      # no dtype cast: DMA native, widen in-kernel
    llm2d = llm_nlp_major.reshape(NUM_NLP, -1)
    batch = emb2d.shape[1]
    assert llm2d.shape[1] == batch

    tb = _choose_tile(batch)
    grid = (pl.cdiv(batch, tb),)   # partial last block handled by masked boundary stores

    out = pl.pallas_call(
        lr_layer2_kernel,
        out_shape=jax.ShapeDtypeStruct((1, batch), jnp.float32),
        grid=grid,
        in_specs=[
            pl.BlockSpec((NUM_FIELDS, tb), lambda i: (0, i)),
            pl.BlockSpec((NUM_NLP, tb), lambda i: (0, i)),
            pl.BlockSpec(memory_space=pltpu.MemorySpace.SMEM),
        ],
        out_specs=pl.BlockSpec((1, tb), lambda i: (0, i)),
        compiler_params=pltpu.CompilerParams(
            dimension_semantics=("parallel",),
            vmem_limit_bytes=_VMEM_LIMIT,
        ),
    )(emb2d, llm2d, jnp.asarray(bias, jnp.float32))
    return out.reshape(batch, 1)


# ---- pure-JAX reference (faithful transcription of the PyTorch forward) ------
def lr_layer2_ref(emb_fields, llm_emb_1, bias):
    # emb_fields: (NUM_FIELDS, B, 1) f32, llm_emb_1: (B, NUM_NLP, 1) f32, bias: (1,) f32
    embed_weights_tensor = emb_fields
    j = 0
    for idx in NLP_INDICES:
        embed_weights_tensor = embed_weights_tensor.at[idx].add(
            LAMBDA_LLM * llm_emb_1[:, j, :]
        )
        j += 1
    output = jnp.sum(embed_weights_tensor, axis=0)  # (B, 1)
    output = output + bias
    return output


if __name__ == "__main__":
    key = jax.random.PRNGKey(0)
    B = 300        # small, non-multiple-of-128 batch -> exercises the masked partial block
    VOCAB = 32     # per-field vocabulary size (synthetic)

    k_tab, k_x, k_llm = jax.random.split(key, 3)

    # EmbeddingLayer(feature_map, 1): one (VOCAB, 1) table per field.
    emb_tables = 0.05 * jax.random.normal(
        k_tab, (NUM_FIELDS, VOCAB, 1), dtype=jnp.float32
    )
    # X: integer feature indices, shape (B, NUM_FIELDS)
    X = jax.random.randint(k_x, (B, NUM_FIELDS), 0, VOCAB, dtype=jnp.int32)

    # llm embeddings kept in their native (bf16) dtype, nlp-slot-major layout (NUM_NLP, B).
    llm_nlp_major = jax.random.normal(k_llm, (NUM_NLP, B), dtype=jnp.float32).astype(
        jnp.bfloat16
    )
    # Reference view (B, NUM_NLP, 1) built from the same bf16-rounded values.
    llm_emb_1 = jnp.transpose(llm_nlp_major.astype(jnp.float32), (1, 0)).reshape(
        B, NUM_NLP, 1
    )

    # bias parameter (nn.Parameter(torch.zeros(1)) in the module; nonzero here to test the add)
    bias = jnp.array([0.37], dtype=jnp.float32)

    # Embedding lookup (glue, plain JAX): (NUM_FIELDS, VOCAB) tables gathered by X.T -> (NUM_FIELDS, B)
    emb_fields_2d = jnp.take_along_axis(emb_tables[:, :, 0], X.T, axis=1)   # (NUM_FIELDS, B) f32
    emb_fields_ref = emb_fields_2d[:, :, None]                              # (NUM_FIELDS, B, 1)

    out = lr_layer2_forward(emb_fields_2d, llm_nlp_major, bias)
    out = jax.block_until_ready(out)

    ref = lr_layer2_ref(emb_fields_ref, llm_emb_1, bias)
    np.testing.assert_allclose(np.asarray(out), np.asarray(ref), rtol=1e-5, atol=1e-5)
    assert out.shape == (B, 1)

    print("KERNEL_OK")
</pallas_src>

<mosaic_0001>
module attributes {stable_mosaic.version = 11 : i64} {
  func.func @lr_layer2_kernel(%arg0: i32, %arg1: memref<8x256xf32, #tpu.memory_space<vmem>>, %arg2: memref<5x256xbf16, #tpu.memory_space<vmem>>, %arg3: memref<1xf32, #tpu.memory_space<smem>>, %arg4: memref<1x256xf32, #tpu.memory_space<vmem>>) attributes {dimension_semantics = [#tpu.dimension_semantics<parallel>], iteration_bounds = array<i64: 2>, scalar_prefetch = 0 : i64, scratch_operands = 0 : i64, tpu.core_type = #tpu.core_type<tc>, window_params = [{transform_indices = @transform_0, window_bounds = array<i64: 8, 256>}, {transform_indices = @transform_1, window_bounds = array<i64: 5, 256>}, {transform_indices = @transform_2, window_bounds = array<i64: 1>}, {transform_indices = @transform_3, window_bounds = array<i64: 1, 256>}]} {
    %c0 = arith.constant 0 : index
    %c0_0 = arith.constant 0 : index
    %0 = vector.load %arg1[%c0, %c0_0] : memref<8x256xf32, #tpu.memory_space<vmem>>, vector<8x256xf32>
    %cst = arith.constant dense<0.000000e+00> : vector<256xf32>
    %1 = vector.multi_reduction <add>, %0, %cst [0] : vector<8x256xf32> to vector<256xf32>
    %2 = vector.shape_cast %1 : vector<256xf32> to vector<1x256xf32>
    %c0_1 = arith.constant 0 : index
    %c0_2 = arith.constant 0 : index
    %3 = vector.load %arg2[%c0_1, %c0_2] : memref<5x256xbf16, #tpu.memory_space<vmem>>, vector<5x256xbf16>
    %4 = arith.extf %3 : vector<5x256xbf16> to vector<5x256xf32>
    %cst_3 = arith.constant dense<0.000000e+00> : vector<256xf32>
    %5 = vector.multi_reduction <add>, %4, %cst_3 [0] : vector<5x256xf32> to vector<256xf32>
    %6 = vector.shape_cast %5 : vector<256xf32> to vector<1x256xf32>
    %cst_4 = arith.constant 1.000000e-01 : f32
    %7 = vector.broadcast %cst_4 : f32 to vector<1x256xf32>
    %8 = arith.mulf %7, %6 : vector<1x256xf32>
    %9 = arith.addf %2, %8 : vector<1x256xf32>
    %c0_5 = arith.constant 0 : index
    %10 = memref.load %arg3[%c0_5] : memref<1xf32, #tpu.memory_space<smem>>
    %11 = vector.broadcast %10 : f32 to vector<1x256xf32>
    %12 = arith.addf %9, %11 : vector<1x256xf32>
    %c0_6 = arith.constant 0 : index
    %c0_7 = arith.constant 0 : index
    %13 = vector.load %arg4[%c0_6, %c0_7] : memref<1x256xf32, #tpu.memory_space<vmem>>, vector<1x256xf32>
    tpu.vector_store %arg4[%c0_6, %c0_7], %12 {strides = array<i32>} : memref<1x256xf32, #tpu.memory_space<vmem>>, vector<1x256xf32>,
    return
  }
  func.func @transform_0(%arg0: i32) -> (i32, i32) {
    %c0_i32 = arith.constant 0 : i32
    %c0_i32_0 = arith.constant 0 : i32
    return %c0_i32, %arg0 : i32, i32
  }
  func.func @transform_1(%arg0: i32) -> (i32, i32) {
    %c0_i32 = arith.constant 0 : i32
    %c0_i32_0 = arith.constant 0 : i32
    return %c0_i32, %arg0 : i32, i32
  }
  func.func @transform_2(%arg0: i32) -> i32 {
    %c0_i32 = arith.constant 0 : i32
    %c0_i32_0 = arith.constant 0 : i32
    return %c0_i32 : i32
  }
  func.func @transform_3(%arg0: i32) -> (i32, i32) {
    %c0_i32 = arith.constant 0 : i32
    %c0_i32_0 = arith.constant 0 : i32
    return %c0_i32, %arg0 : i32, i32
  }
}

</mosaic_0001>

<llo_original>
// kernel: tpu_custom_call.1
$region0: #{tpu_custom_call.1}
  #allocation0 [shape = 'u32[]', space=smem, size = 0x4, offset = 0x4, fixed_abs, tag = 'smem constant byte address 0x4 - core index']
  #allocation1 [shape = 'u32[72,128]{1,0:T(1,128)}', space=vmem, size = 0x9000, scoped, tag = 'internal scratch']
  #allocation2 [shape = 'f32[1]{0:T(128)S(6)}', space=smem, size = 0x200, scoped, tag = 'scoped memory for tpu_custom_call.1']
  %s0 = inlined_call_operand.hbm [shape: f32[8,300], index: 0, kind: input, shape index: {}]
  %s1 = inlined_call_operand.hbm [shape: bf16[5,300], index: 1, kind: input, shape index: {}]
  %s2 = inlined_call_operand.<no memory space> [shape: f32[1], index: 2, kind: input, shape index: {}]
  %s3 = inlined_call_operand.hbm [shape: f32[1,300], index: 3, kind: output, shape index: {}]
  %s4 = sld [smem:[#allocation0]]
  $region53: #{tpu_custom_call.1} parent=0
    _
  %s6 = ssub.s32 1, %s4
  %s7 = scalar_select 0, %s6, %s4
  %8 = sst [smem:[#allocation2]] %s2
  $region1: #{tpu_custom_call.1} parent=0
    #allocation3 [shape = 'u8[16384]{0}', space=vmem, size = 0x4000, scoped, tag = 'input window, operand 0']
    #allocation4 [shape = 's32[2]{0}', space=sflag, size = 0x8, scoped, tag = 'scoped memory for tpu_custom_call.1']
    #allocation5 [shape = 's32[2]{0}', space=sflag, size = 0x8, scoped, tag = 'scoped memory for tpu_custom_call.1']
    #allocation6 [shape = 'u8[8192]{0}', space=vmem, size = 0x2000, scoped, tag = 'input window, operand 1']
    #allocation7 [shape = 's32[2]{0}', space=sflag, size = 0x8, scoped, tag = 'scoped memory for tpu_custom_call.1']
    #allocation8 [shape = 'u8[2048]{0}', space=vmem, size = 0x800, scoped, tag = 'output window, operand 0']
    %9 = vsyncpa [#allocation4], 0
    %s10 = scalar_lea.sflag [#allocation4], 1
    %11 = vsyncpa %s10, 0
    %12 = vsyncpa [#allocation7], 0
    %s13 = scalar_lea.sflag [#allocation7], 1
    %14 = vsyncpa %s13, 0
    %15 = vsyncpa [#allocation5], 0
    %s16 = scalar_lea.sflag [#allocation5], 1
    %17 = vsyncpa %s16, 0
    loop: start=0, step=1, limit=4
    $region2: #{tpu_custom_call.1} parent=1 // loop_pre_header
      _
    $region3: #{tpu_custom_call.1} parent=1 // loop_header
      %s19 = sphi 0, %s23
      %p20 = scmp.ge.s32.totalorder %s19, 4
      %s29 = sphi 0, %s31
      %s32 = sphi 0, %s29
      %s33 = sphi 0, %s32
      %s49 = sphi 0, %s33
      %s55 = sphi 0, %s57
      %s58 = sphi 0, %s55
      %s59 = sphi 0, %s58
      %s75 = sphi 0, %s59
      %s79 = sphi 0, %s79
      %s81 = sphi 0, %s79
      %s82 = sphi 0, %s81
      %s96 = sphi 0, %s82
      %s102 = sphi 0, %s104
      %s105 = sphi 0, %s102
      %s106 = sphi 0, %s105
      %s122 = sphi 0, %s106
    $region4: #{tpu_custom_call.1} parent=1 // loop_header_branch
      %22 = sbr.rel (%p20) target = $region8
    $region5: #{tpu_custom_call.1} parent=1 // loop_body
      %s24 = ssub.s32 %s19, 1
      %s25 = ssub.s32 %s19, 2
      %s26 = sadd.s32 %s19, 1
      %s27 = ssub.s32 %s19, %s26
      %p28 = scmp.eq.s32.totalorder %s27, 0
      %s30 = sadd.s32 %s29, 1
      %s31 = scalar_select %p28, %s29, %s30
      %p34 = pneg %p28
      %p35 = scmp.eq.s32.totalorder %s19, 1
      %p36 = por %p34, %p35
      %p37 = scmp.ne.s32.totalorder %s29, %s32
      %p38 = scmp.eq.s32.totalorder %s19, 0
      %p39 = por %p37, %p38
      %p40 = scmp.ne.s32.totalorder %s29, %s32
      %p41 = scmp.eq.s32.totalorder %s24, 1
      %p42 = por %p40, %p41
      %p43 = scmp.ne.s32.totalorder %s32, %s33
      %p44 = scmp.eq.s32.totalorder %s24, 0
      %p45 = por %p43, %p44
      %p46 = scmp.ne.s32.totalorder %s32, %s33
      %p47 = scmp.eq.s32.totalorder %s25, 1
      %p48 = por %p46, %p47
      %p50 = scmp.ne.s32.totalorder %s33, %s49
      %p51 = scmp.eq.s32.totalorder %s25, 0
      %p52 = por %p50, %p51
      %s53 = ssub.s32 %s19, %s26
      %p54 = scmp.eq.s32.totalorder %s53, 0
      %s56 = sadd.s32 %s55, 1
      %s57 = scalar_select %p54, %s55, %s56
      %p60 = pneg %p54
      %p61 = scmp.eq.s32.totalorder %s19, 1
      %p62 = por %p60, %p61
      %p63 = scmp.ne.s32.totalorder %s55, %s58
      %p64 = scmp.eq.s32.totalorder %s19, 0
      %p65 = por %p63, %p64
      %p66 = scmp.ne.s32.totalorder %s55, %s58
      %p67 = scmp.eq.s32.totalorder %s24, 1
      %p68 = por %p66, %p67
      %p69 = scmp.ne.s32.totalorder %s58, %s59
      %p70 = scmp.eq.s32.totalorder %s24, 0
      %p71 = por %p69, %p70
      %p72 = scmp.ne.s32.totalorder %s58, %s59
      %p73 = scmp.eq.s32.totalorder %s25, 1
      %p74 = por %p72, %p73
      %p76 = scmp.ne.s32.totalorder %s59, %s75
      %p77 = scmp.eq.s32.totalorder %s25, 0
      %p78 = por %p76, %p77
      %s80 = sadd.s32 %s79, 1
      %p83 = scmp.eq.s32.totalorder %s19, 1
      %p84 = scmp.ne.s32.totalorder %s79, %s81
      %p85 = scmp.eq.s32.totalorder %s19, 0
      %p86 = por %p84, %p85
      %p87 = scmp.ne.s32.totalorder %s79, %s81
      %p88 = scmp.eq.s32.totalorder %s24, 1
      %p89 = por %p87, %p88
      %p90 = scmp.ne.s32.totalorder %s81, %s82
      %p91 = scmp.eq.s32.totalorder %s24, 0
      %p92 = por %p90, %p91
      %p93 = scmp.ne.s32.totalorder %s81, %s82
      %p94 = scmp.eq.s32.totalorder %s25, 1
      %p95 = por %p93, %p94
      %p97 = scmp.ne.s32.totalorder %s82, %s96
      %p98 = scmp.eq.s32.totalorder %s25, 0
      %p99 = por %p97, %p98
      %s100 = ssub.s32 %s19, %s26
      %p101 = scmp.eq.s32.totalorder %s100, 0
      %s103 = sadd.s32 %s102, 1
      %s104 = scalar_select %p101, %s102, %s103
      %p107 = pneg %p101
      %p108 = scmp.eq.s32.totalorder %s19, 1
      %p109 = por %p107, %p108
      %p110 = scmp.ne.s32.totalorder %s102, %s105
      %p111 = scmp.eq.s32.totalorder %s19, 0
      %p112 = por %p110, %p111
      %p113 = scmp.ne.s32.totalorder %s102, %s105
      %p114 = scmp.eq.s32.totalorder %s24, 1
      %p115 = por %p113, %p114
      %p116 = scmp.ne.s32.totalorder %s105, %s106
      %p117 = scmp.eq.s32.totalorder %s24, 0
      %p118 = por %p116, %p117
      %p119 = scmp.ne.s32.totalorder %s105, %s106
      %p120 = scmp.eq.s32.totalorder %s25, 1
      %p121 = por %p119, %p120
      %p123 = scmp.ne.s32.totalorder %s106, %s122
      %p124 = scmp.eq.s32.totalorder %s25, 0
      %p125 = por %p123, %p124
      %p126 = scmp.le.s32.totalorder 1, %s19
      %p127 = scmp.lt.s32.totalorder %s19, 3
      %p128 = pnand %p126, %p127
      %p129 = pneg %p128
      // Predicated region
      $region9: #{tpu_custom_call.1} parent=5 // pred_check
        _
      $region10: #{tpu_custom_call.1} parent=5 // pred_check_branch
        %131 = sbr.rel (%p128) target = $region12
      $region11: #{tpu_custom_call.1} parent=5 // pred_region
        %s132 = ssub.s32 %s19, 1
        // Predicated region
        $region13: #{tpu_custom_call.1} parent=11 // pred_check
          %p133 = pneg %p92
        $region14: #{tpu_custom_call.1} parent=11 // pred_check_branch
          %135 = sbr.rel (%p133) target = $region16
        $region15: #{tpu_custom_call.1} parent=11 // pred_region
          _
        $region16: #{tpu_custom_call.1} parent=11 // pred_fallthru
          _
      $region12: #{tpu_custom_call.1} parent=5 // pred_fallthru
        _
      %p136 = scmp.lt.s32.totalorder %s19, 2
      // Predicated region
      $region17: #{tpu_custom_call.1} parent=5 // pred_check
        %p137 = pneg %p136
      $region18: #{tpu_custom_call.1} parent=5 // pred_check_branch
        %139 = sbr.rel (%p137) target = $region20
      $region19: #{tpu_custom_call.1} parent=5 // pred_region
        // Predicated region
        $region21: #{tpu_custom_call.1} parent=19 // pred_check
          %p140 = pneg %p39
        $region22: #{tpu_custom_call.1} parent=19 // pred_check_branch
          %142 = sbr.rel (%p140) target = $region24
        $region23: #{tpu_custom_call.1} parent=19 // pred_region
          %s143 = sand.u32 %s29, 1
          %s144 = scalar_lea.sflag [#allocation4], %s143
          %s145 = sand.u32 %s29, 1
          %s146 = smul.addr %s145, 16
          %s147 = scalar_lea.vmem [#allocation3], %s146
          %s148 = smul.u32 2, %s19
          %s149 = ssub.s32 3, %s148
          %p150 = scmp.lt.s32.totalorder %s149, 2
          %s151 = scalar_select %p150, %s149, 2
          %s152 = smul.u32 8, %s151
          %s153 = ssub.s32 16, %s152
          %s154 = sshll.u32 %s153, 4
          %155 = vsyncadd %s144, %s154
          %p156 = scmp.ne.s32.totalorder 0, %s152
          %s157 = smul.addr %s148, 8
          %s158 = scalar_lea.hbm %s0, %s157
          %s159 = smul.u32 %s151, 8
          %s160 = sshll.u32 %s159, 4
          %s161 = sshll.u32 %s158, 4
          %s162 = int_to_ptr.hbm [resolvable:$true] %s161
          %s163 = sshll.u32 %s147, 4
          %s164 = int_to_ptr.vmem [resolvable:$true] %s163
          %166 = dma.hbm_to_vmem [thread:$0]  (%p156), %s162, %s160, %s164, %s144
        $region24: #{tpu_custom_call.1} parent=19 // pred_fallthru
          _
        // Predicated region
        $region25: #{tpu_custom_call.1} parent=19 // pred_check
          %p167 = pneg %p65
        $region26: #{tpu_custom_call.1} parent=19 // pred_check_branch
          %169 = sbr.rel (%p167) target = $region28
        $region27: #{tpu_custom_call.1} parent=19 // pred_region
          %s170 = sand.u32 %s55, 1
          %s171 = scalar_lea.sflag [#allocation7], %s170
          %s172 = sand.u32 %s55, 1
          %s173 = smul.addr %s172, 8
          %s174 = scalar_lea.vmem [#allocation6], %s173
          %s175 = smul.u32 2, %s19
          %s176 = ssub.s32 3, %s175
          %p177 = scmp.lt.s32.totalorder %s176, 2
          %s178 = scalar_select %p177, %s176, 2
          %s179 = smul.u32 4, %s178
          %s180 = ssub.s32 8, %s179
          %s181 = sshll.u32 %s180, 4
          %182 = vsyncadd %s171, %s181
          %p183 = scmp.ne.s32.totalorder 0, %s179
          %s184 = smul.addr %s175, 4
          %s185 = scalar_lea.hbm %s1, %s184
          %s186 = smul.u32 %s178, 4
          %s187 = sshll.u32 %s186, 4
          %s188 = sshll.u32 %s185, 4
          %s189 = int_to_ptr.hbm [resolvable:$true] %s188
          %s190 = sshll.u32 %s174, 4
          %s191 = int_to_ptr.vmem [resolvable:$true] %s190
          %193 = dma.hbm_to_vmem [thread:$0]  (%p183), %s189, %s187, %s191, %s171
        $region28: #{tpu_custom_call.1} parent=19 // pred_fallthru
          _
      $region20: #{tpu_custom_call.1} parent=5 // pred_fallthru
        _
      %p194 = scmp.le.s32.totalorder 1, %s19
      %p195 = scmp.lt.s32.totalorder %s19, 3
      %p196 = pnand %p194, %p195
      %p197 = pneg %p196
      // Predicated region
      $region29: #{tpu_custom_call.1} parent=5 // pred_check
        _
      $region30: #{tpu_custom_call.1} parent=5 // pred_check_branch
        %199 = sbr.rel (%p196) target = $region32
      $region31: #{tpu_custom_call.1} parent=5 // pred_region
        %s200 = ssub.s32 %s19, 1
        %s201 = sand.u32 %s32, 1
        %s202 = scalar_lea.sflag [#allocation4], %s201
        %s203 = sand.u32 %s32, 1
        %s204 = smul.addr %s203, 16
        %s205 = scalar_lea.vmem [#allocation3], %s204
        // Predicated region
        $region33: #{tpu_custom_call.1} parent=31 // pred_check
          %p206 = pneg %p45
        $region34: #{tpu_custom_call.1} parent=31 // pred_check_branch
          %208 = sbr.rel (%p206) target = $region36
        $region35: #{tpu_custom_call.1} parent=31 // pred_region
          %210 = dma.done %s202, 256
        $region36: #{tpu_custom_call.1} parent=31 // pred_fallthru
          _
        %s211 = sand.u32 %s58, 1
        %s212 = scalar_lea.sflag [#allocation7], %s211
        %s213 = sand.u32 %s58, 1
        %s214 = smul.addr %s213, 8
        %s215 = scalar_lea.vmem [#allocation6], %s214
        // Predicated region
        $region37: #{tpu_custom_call.1} parent=31 // pred_check
          %p216 = pneg %p71
        $region38: #{tpu_custom_call.1} parent=31 // pred_check_branch
          %218 = sbr.rel (%p216) target = $region40
        $region39: #{tpu_custom_call.1} parent=31 // pred_region
          %220 = dma.done %s212, 128
        $region40: #{tpu_custom_call.1} parent=31 // pred_fallthru
          _
        %s221 = sand.u32 %s32, 1
        %s222 = scalar_lea.sflag [#allocation4], %s221
        %s223 = sand.u32 %s32, 1
        %s224 = smul.addr %s223, 16
        %s225 = scalar_lea.vmem [#allocation3], %s224
        %p226 = pneg %p45
        %p227 = pneg %p42
        %s228 = sand.u32 %s58, 1
        %s229 = scalar_lea.sflag [#allocation7], %s228
        %s230 = sand.u32 %s58, 1
        %s231 = smul.addr %s230, 8
        %s232 = scalar_lea.vmem [#allocation6], %s231
        %p233 = pneg %p71
        %p234 = pneg %p68
        %p235 = pneg %p92
        %p236 = pneg %p89
        %p237 = pneg %p118
        %p238 = pneg %p115
        %s239 = sand.u32 %s105, 1
        %s240 = scalar_lea.sflag [#allocation5], %s239
        %s241 = sand.u32 %s105, 1
        %s242 = smul.addr %s241, 2
        %s243 = scalar_lea.vmem [#allocation8], %s242
        %s244 = smul.u32 2, %s24
        %s245 = ssub.s32 3, %s244
        %p246 = scmp.lt.s32.totalorder %s245, 2
        %s247 = scalar_select %p246, %s245, 2
        %s248 = smul.u32 8, %s247
        %s249 = smul.u32 2, %s24
        %s250 = ssub.s32 3, %s249
        %p251 = scmp.lt.s32.totalorder %s250, 2
        %s252 = scalar_select %p251, %s250, 2
        %s253 = smul.u32 4, %s252
        %s254 = smul.u32 2, %s24
        %s255 = ssub.s32 3, %s254
        %p256 = scmp.lt.s32.totalorder %s255, 2
        %s257 = scalar_select %p256, %s255, 2
        %v258 = vld [vmem:[%s205] sm:$0xff]
        %v259 = vld [vmem:[%s205 + $0x8] sm:$0xff]
        %v260 = vrot.slane %v258, 4
        %v261 = vadd.f32 %v258, %v260
        %v262 = vrot.slane %v261, 2
        %v263 = vadd.f32 %v261, %v262
        %v264 = vrot.slane %v263, 1
        %v265 = vadd.f32 %v263, %v264
        %v266 = vrot.slane %v259, 4
        %v267 = vadd.f32 %v259, %v266
        %v268 = vrot.slane %v267, 2
        %v269 = vadd.f32 %v267, %v268
        %v270 = vrot.slane %v269, 1
        %v271 = vadd.f32 %v269, %v270
        %v272 = vld [vmem:[%s215] sm:$0x77]
        %v273 = vunpack.c.l.bf16 %v272
        %v274 = vunpack.c.h.bf16 %v272
        %vm275 = vcmask 1044480
        %v276 = vsel %vm275, %v273, 0.0
        %v277 = vrot.slane %v276, 4
        %v278 = vadd.f32 %v276, %v277
        %v279 = vrot.slane %v278, 2
        %v280 = vadd.f32 %v278, %v279
        %v281 = vrot.slane %v280, 1
        %v282 = vadd.f32 %v280, %v281
        %v283 = vsel %vm275, %v274, 0.0
        %v284 = vrot.slane %v283, 4
        %v285 = vadd.f32 %v283, %v284
        %v286 = vrot.slane %v285, 2
        %v287 = vadd.f32 %v285, %v286
        %v288 = vrot.slane %v287, 1
        %v289 = vadd.f32 %v287, %v288
        %v290 = vmul.f32 %v282, 0.1
        %v291 = vmul.f32 %v289, 0.1
        %v292 = vadd.f32 %v265, %v290
        %v293 = vadd.f32 %v271, %v291
        %s294 = sld [smem:[#allocation2]]
        %v295 = vstv %s294
        %v296 = vadd.f32 %v292, %v295
        %v297 = vadd.f32 %v293, %v295
        %v300 = vrot.slane %v297, 7
        %vm301 = vcmask 1040384
        %v302 = vsel %vm301, %v296, %v300
        %v304 = vlaneseq
        %vm305 = vcmp.ge.s32.totalorder %v304, 0
        %vm306 = vcmp.lt.s32.totalorder %v304, 256
        %vm307 = vmand %vm305, %vm306
        %308 = vst.msk [vmem:[%s243] sm:$0x3] %vm307, %v302
        %s309 = sand.u32 %s105, 1
        %s310 = scalar_lea.sflag [#allocation5], %s309
        %s311 = sand.u32 %s105, 1
        %s312 = smul.addr %s311, 2
        %s313 = scalar_lea.vmem [#allocation8], %s312
        // Predicated region
        $region41: #{tpu_custom_call.1} parent=31 // pred_check
          %p314 = pneg %p115
        $region42: #{tpu_custom_call.1} parent=31 // pred_check_branch
          %316 = sbr.rel (%p314) target = $region44
        $region43: #{tpu_custom_call.1} parent=31 // pred_region
          %s317 = smul.u32 2, %s24
          %s318 = ssub.s32 3, %s317
          %p319 = scmp.lt.s32.totalorder %s318, 2
          %s320 = scalar_select %p319, %s318, 2
          %s321 = ssub.s32 2, %s320
          %s322 = sshll.u32 %s321, 4
          %323 = vsyncadd %s310, %s322
          %p324 = scmp.ne.s32.totalorder 0, %s320
          %s325 = scalar_lea.hbm %s3, %s317
          %s326 = sshll.u32 %s320, 4
          %s327 = sshll.u32 %s313, 4
          %s328 = int_to_ptr.vmem [resolvable:$true] %s327
          %s329 = sshll.u32 %s325, 4
          %s330 = int_to_ptr.hbm [resolvable:$true] %s329
          %332 = dma.vmem_to_hbm [thread:$0]  (%p324), %s328, %s326, %s330, %s310
        $region44: #{tpu_custom_call.1} parent=31 // pred_fallthru
          _
      $region32: #{tpu_custom_call.1} parent=5 // pred_fallthru
        _
      %p333 = scmp.le.s32.totalorder 2, %s19
      // Predicated region
      $region45: #{tpu_custom_call.1} parent=5 // pred_check
        %p334 = pneg %p333
      $region46: #{tpu_custom_call.1} parent=5 // pred_check_branch
        %336 = sbr.rel (%p334) target = $region48
      $region47: #{tpu_custom_call.1} parent=5 // pred_region
        %s337 = ssub.s32 %s19, 2
        // Predicated region
        $region49: #{tpu_custom_call.1} parent=47 // pred_check
          %p338 = pneg %p121
        $region50: #{tpu_custom_call.1} parent=47 // pred_check_branch
          %340 = sbr.rel (%p338) target = $region52
        $region51: #{tpu_custom_call.1} parent=47 // pred_region
          %s341 = sand.u32 %s106, 1
          %s342 = scalar_lea.sflag [#allocation5], %s341
          %s343 = sand.u32 %s106, 1
          %s344 = smul.addr %s343, 2
          %s345 = scalar_lea.vmem [#allocation8], %s344
          %347 = dma.done %s342, 32
        $region52: #{tpu_custom_call.1} parent=47 // pred_fallthru
          _
      $region48: #{tpu_custom_call.1} parent=5 // pred_fallthru
        _
    $region6: #{tpu_custom_call.1} parent=1 // loop_footer
      %s23 = sadd.s32 1, %s19
    $region7: #{tpu_custom_call.1} parent=1 // loop_footer_branch
      %18 = sbr.rel target = $region3
    $region8: #{tpu_custom_call.1} parent=1 // loop_exit
      _
    %348 = vsyncpa [#allocation4], 1
    %s349 = scalar_lea.sflag [#allocation4], 1
    %350 = vsyncpa %s349, 1
    %351 = vsyncpa [#allocation7], 1
    %s352 = scalar_lea.sflag [#allocation7], 1
    %353 = vsyncpa %s352, 1
    %354 = vsyncpa [#allocation5], 1
    %s355 = scalar_lea.sflag [#allocation5], 1
    %356 = vsyncpa %s355, 1

</llo_original>
